<compile_context>
chip_gen: v5e
topology: v5e:2x2
jax: 0.10.0
libtpu: 0.0.40
codegen_flags: <defaults>
</compile_context>

<pallas_src>
import jax
import jax.numpy as jnp
from jax.experimental import pallas as pl
from jax.experimental.pallas import tpu as pltpu


def nsp_head_kernel(x_ref, w_ref, b_ref, o_ref):
    # x_ref: (TB, H) VMEM | w_ref: (2, H) VMEM | b_ref: (2,) SMEM | o_ref: (TB, 2) VMEM
    # Single MXU push, f32 accumulation, no weight transpose in the wrapper.
    logits = jax.lax.dot_general(
        x_ref[...], w_ref[...],
        dimension_numbers=(((1,), (1,)), ((), ())),      # contract over H on both
        preferred_element_type=jnp.float32,
    )                                                    # (TB, 2) f32

    # Bias add from two SMEM scalars via a lane select -- no concat / shuffle.
    lane = jax.lax.broadcasted_iota(jnp.int32, logits.shape, dimension=1)
    bias = jnp.where(lane == 0, b_ref[0], b_ref[1])
    o_ref[...] = (logits + bias).astype(o_ref.dtype)


def _pick_batch_tile(batch, hidden, dtype):
    """Batch tile: big enough to amortize per-step overhead, small enough to
    double-buffer comfortably, and split >=2-4 ways for megacore at large B."""
    itemsize = jnp.dtype(dtype).itemsize
    # Native sublane packing: 8 rows/vreg at 32-bit, 16 at 16-bit, 32 at 8-bit.
    sublane = max(8, 32 // itemsize)

    # Per-row VMEM footprint: the x row plus the lane-padded (tile_b, 2) output
    # row (pads to 128 lanes => up to 512 B/row, counted conservatively as f32).
    bytes_per_row = hidden * itemsize + 128 * 4
    budget_bytes = 6 * 1024 * 1024                 # per buffer (double-buffered)
    tile = budget_bytes // max(1, bytes_per_row)

    # Keep >=2 (>=4) grid steps once the whole x tensor is large enough that
    # DMA time dominates the ~0.35 us per-step overhead, so both v7x
    # TensorCores take a share of the HBM-bound batch.
    total_x_bytes = batch * hidden * itemsize
    if total_x_bytes >= 8 * 1024 * 1024:
        tile = min(tile, pl.cdiv(batch, 4))
    elif total_x_bytes >= 2 * 1024 * 1024:
        tile = min(tile, pl.cdiv(batch, 2))

    tile = max(sublane, (tile // sublane) * sublane)
    if tile >= batch:
        return batch                               # full-extent block is always legal
    return tile


def mobilebert_only_nsp_head(pooled_output, weight, bias):
    """pooled_output: (B, H); weight: (2, H) (native PyTorch layout); bias: (2,)."""
    B, H = pooled_output.shape
    assert weight.shape == (2, H)
    assert bias.shape == (2,)

    x_itemsize = jnp.dtype(pooled_output.dtype).itemsize
    tile_b = _pick_batch_tile(B, H, pooled_output.dtype)
    grid = (pl.cdiv(B, tile_b),)

    # Double-buffered x (2 x ~6 MiB) + lane-padded out (2 x <=1.3 MiB) +
    # sublane-padded weight stay well under 32 MiB, which fits every chip's
    # physical VMEM (v7x: 64 MiB) and overrides v5e's 16 MiB scoped default.
    vmem_limit_bytes = 32 * 1024 * 1024

    cost = pl.CostEstimate(
        flops=2 * B * H * 2 + 2 * B,               # (B,H)x(H,2) matmul + bias add
        transcendentals=0,
        bytes_accessed=B * H * x_itemsize + 2 * H * x_itemsize + B * 2 * x_itemsize + 8,
    )

    return pl.pallas_call(
        nsp_head_kernel,
        out_shape=jax.ShapeDtypeStruct((B, 2), pooled_output.dtype),
        grid=grid,
        in_specs=[
            # x: tiled over batch, H stays on the lane axis.
            pl.BlockSpec((tile_b, H), lambda i: (i, 0)),
            # weight: tiny, lane-dense (2, H), whole array every step.
            pl.BlockSpec((2, H), lambda i: (0, 0)),
            # bias: two scalars straight into SMEM (no padded VMEM tile).
            pl.BlockSpec(memory_space=pltpu.MemorySpace.SMEM),
        ],
        out_specs=pl.BlockSpec((tile_b, 2), lambda i: (i, 0)),
        compiler_params=pltpu.CompilerParams(
            dimension_semantics=("parallel",),
            vmem_limit_bytes=vmem_limit_bytes,
        ),
        cost_estimate=cost,
    )(pooled_output, weight, bias)


if __name__ == "__main__":
    key = jax.random.PRNGKey(0)
    batch, hidden = 2, 32

    k_x, k_w, k_b = jax.random.split(key, 3)
    pooled_output = jax.random.normal(k_x, (batch, hidden), dtype=jnp.float32)
    # Deterministic synthetic parameters (shapes from nn.Linear(hidden_size, 2)).
    weight = jax.random.normal(k_w, (2, hidden), dtype=jnp.float32) * 0.02
    bias = jax.random.normal(k_b, (2,), dtype=jnp.float32) * 0.02

    out = jax.block_until_ready(mobilebert_only_nsp_head(pooled_output, weight, bias))

    # Reference check in plain JAX (matches PyTorch Linear semantics: x @ W.T + b).
    ref = pooled_output @ weight.T + bias
    assert out.shape == (batch, 2)
    assert jnp.allclose(out, ref, atol=1e-5, rtol=1e-5)

    print("KERNEL_OK")
</pallas_src>

<mosaic_0001>
module attributes {stable_mosaic.version = 11 : i64} {
  func.func @nsp_head_kernel(%arg0: i32, %arg1: memref<2x32xf32, #tpu.memory_space<vmem>>, %arg2: memref<2x32xf32, #tpu.memory_space<vmem>>, %arg3: memref<2xf32, #tpu.memory_space<smem>>, %arg4: memref<2x2xf32, #tpu.memory_space<vmem>>) attributes {dimension_semantics = [#tpu.dimension_semantics<parallel>], iteration_bounds = array<i64: 1>, scalar_prefetch = 0 : i64, scratch_operands = 0 : i64, tpu.core_type = #tpu.core_type<tc>, window_params = [{transform_indices = @transform_0, window_bounds = array<i64: 2, 32>}, {pipeline_mode = #tpu.pipeline_mode<synchronous>, transform_indices = @transform_1, window_bounds = array<i64: 2, 32>}, {transform_indices = @transform_2, window_bounds = array<i64: 2>}, {transform_indices = @transform_3, window_bounds = array<i64: 2, 2>}]} {
    %c0 = arith.constant 0 : index
    %c0_0 = arith.constant 0 : index
    %0 = vector.load %arg1[%c0, %c0_0] : memref<2x32xf32, #tpu.memory_space<vmem>>, vector<2x32xf32>
    %c0_1 = arith.constant 0 : index
    %c0_2 = arith.constant 0 : index
    %1 = vector.load %arg2[%c0_1, %c0_2] : memref<2x32xf32, #tpu.memory_space<vmem>>, vector<2x32xf32>
    %cst = arith.constant dense<0.000000e+00> : vector<2x2xf32>
    %2 = tpu.matmul %0, %1, %cst {dimension_numbers = #tpu.dot_dimension_numbers<[1], [1], [0], [0], [0, 0, 1, 0], [], []>} : vector<2x32xf32>, vector<2x32xf32>, vector<2x2xf32> -> vector<2x2xf32>
    %3 = tpu.iota {dimensions = array<i32: 1>} : vector<2x2xi32>
    %c0_i32 = arith.constant 0 : i32
    %4 = vector.broadcast %c0_i32 : i32 to vector<2x2xi32>
    %5 = arith.cmpi eq, %3, %4 : vector<2x2xi32>
    %c0_3 = arith.constant 0 : index
    %6 = memref.load %arg3[%c0_3] : memref<2xf32, #tpu.memory_space<smem>>
    %c1 = arith.constant 1 : index
    %7 = memref.load %arg3[%c1] : memref<2xf32, #tpu.memory_space<smem>>
    %8 = vector.broadcast %6 : f32 to vector<2x2xf32>
    %9 = vector.broadcast %7 : f32 to vector<2x2xf32>
    %10 = arith.select %5, %8, %9 : vector<2x2xi1>, vector<2x2xf32>
    %11 = arith.addf %2, %10 : vector<2x2xf32>
    %c0_4 = arith.constant 0 : index
    %c0_5 = arith.constant 0 : index
    %12 = vector.load %arg4[%c0_4, %c0_5] : memref<2x2xf32, #tpu.memory_space<vmem>>, vector<2x2xf32>
    tpu.vector_store %arg4[%c0_4, %c0_5], %11 {strides = array<i32>} : memref<2x2xf32, #tpu.memory_space<vmem>>, vector<2x2xf32>,
    return
  }
  func.func @transform_0(%arg0: i32) -> (i32, i32) {
    %c0_i32 = arith.constant 0 : i32
    %c0_i32_0 = arith.constant 0 : i32
    return %arg0, %c0_i32 : i32, i32
  }
  func.func @transform_1(%arg0: i32) -> (i32, i32) {
    %c0_i32 = arith.constant 0 : i32
    %c0_i32_0 = arith.constant 0 : i32
    %c0_i32_1 = arith.constant 0 : i32
    return %c0_i32, %c0_i32_0 : i32, i32
  }
  func.func @transform_2(%arg0: i32) -> i32 {
    %c0_i32 = arith.constant 0 : i32
    %c0_i32_0 = arith.constant 0 : i32
    return %c0_i32 : i32
  }
  func.func @transform_3(%arg0: i32) -> (i32, i32) {
    %c0_i32 = arith.constant 0 : i32
    %c0_i32_0 = arith.constant 0 : i32
    return %arg0, %c0_i32 : i32, i32
  }
}

</mosaic_0001>

<llo_original>
// kernel: tpu_custom_call.1
$region0: #{tpu_custom_call.1}
  #allocation0 [shape = 'u32[]', space=smem, size = 0x4, offset = 0x4, fixed_abs, tag = 'smem constant byte address 0x4 - core index']
  #allocation1 [shape = 'u32[72,128]{1,0:T(1,128)}', space=vmem, size = 0x9000, scoped, tag = 'internal scratch']
  %s0 = inlined_call_operand.hbm [shape: f32[2,32], index: 0, kind: input, shape index: {}]
  %s1 = inlined_call_operand.hbm [shape: f32[2,32], index: 1, kind: input, shape index: {}]
  %s2 = inlined_call_operand.vmem [shape: f32[2], index: 2, kind: input, shape index: {}]
  %s3 = inlined_call_operand.hbm [shape: f32[2,2], index: 3, kind: output, shape index: {}]
  %s4 = sld [smem:[#allocation0]]
  $region34: #{tpu_custom_call.1} parent=0
    _
  %s6 = ssub.s32 1, %s4
  %s7 = scalar_select 0, %s6, %s4
  $region1: #{tpu_custom_call.1} parent=0
    #allocation2 [shape = 'u8[1024]{0}', space=vmem, size = 0x400, scoped, tag = 'input window, operand 0, single buffered']
    #allocation3 [shape = 's32[1]{0}', space=sflag, size = 0x4, scoped, tag = 'scoped memory for tpu_custom_call.1']
    #allocation4 [shape = 's32[1]{0}', space=sflag, size = 0x4, scoped, tag = 'scoped memory for tpu_custom_call.1']
    #allocation5 [shape = 's32[1]{0}', space=sflag, size = 0x4, scoped, tag = 'scoped memory for tpu_custom_call.1']
    #allocation6 [shape = 'u8[1024]{0}', space=vmem, size = 0x400, scoped, tag = 'input window, operand 1, single buffered']
    #allocation7 [shape = 's32[1]{0}', space=sflag, size = 0x4, scoped, tag = 'scoped memory for tpu_custom_call.1']
    #allocation8 [shape = 'u8[512]{0}', space=smem, size = 0x200, scoped, tag = 'input window, operand 2, single buffered']
    #allocation9 [shape = 'u8[1024]{0}', space=vmem, size = 0x400, scoped, tag = 'output window, operand 0, single buffered']
    %8 = vsyncpa [#allocation3], 0
    %9 = vsyncpa [#allocation7], 0
    %10 = vsyncpa [#allocation5], 0
    %11 = vsyncpa [#allocation4], 0
    // Predicated region
    $region2: #{tpu_custom_call.1} parent=1 // pred_check
      _
    $region3: #{tpu_custom_call.1} parent=1 // pred_check_branch
      %13 = sbr.rel (0) target = $region5
    $region4: #{tpu_custom_call.1} parent=1 // pred_region
      %15 = vsyncadd [#allocation3], 0
      %s17 = sshll.u32 %s0, 4
      %s18 = int_to_ptr.hbm [resolvable:$true] %s17
      %s19 = sshll.u32 [#allocation2], 4
      %s20 = int_to_ptr.vmem [resolvable:$true] %s19
      %22 = dma.hbm_to_vmem [thread:$0]  %s18, 32, %s20, [#allocation3]
    $region5: #{tpu_custom_call.1} parent=1 // pred_fallthru
      _
    // Predicated region
    $region6: #{tpu_custom_call.1} parent=1 // pred_check
      _
    $region7: #{tpu_custom_call.1} parent=1 // pred_check_branch
      %24 = sbr.rel (0) target = $region9
    $region8: #{tpu_custom_call.1} parent=1 // pred_region
      %26 = vsyncadd [#allocation7], 0
      %s28 = sshll.u32 %s1, 4
      %s29 = int_to_ptr.hbm [resolvable:$true] %s28
      %s30 = sshll.u32 [#allocation6], 4
      %s31 = int_to_ptr.vmem [resolvable:$true] %s30
      %33 = dma.hbm_to_vmem [thread:$0]  %s29, 32, %s31, [#allocation7]
    $region9: #{tpu_custom_call.1} parent=1 // pred_fallthru
      _
    // Predicated region
    $region10: #{tpu_custom_call.1} parent=1 // pred_check
      _
    $region11: #{tpu_custom_call.1} parent=1 // pred_check_branch
      %35 = sbr.rel (0) target = $region13
    $region12: #{tpu_custom_call.1} parent=1 // pred_region
      %37 = vsyncadd [#allocation5], 0
      %s39 = sshll.u32 %s2, 4
      %s40 = int_to_ptr.vmem [resolvable:$true] %s39
      %42 = dma.vmem_to_smem %s40, 16, [#allocation8], [#allocation5]
    $region13: #{tpu_custom_call.1} parent=1 // pred_fallthru
      _
    // Predicated region
    $region14: #{tpu_custom_call.1} parent=1 // pred_check
      _
    $region15: #{tpu_custom_call.1} parent=1 // pred_check_branch
      %44 = sbr.rel (0) target = $region17
    $region16: #{tpu_custom_call.1} parent=1 // pred_region
      %46 = dma.done [#allocation3], 32
    $region17: #{tpu_custom_call.1} parent=1 // pred_fallthru
      _
    // Predicated region
    $region18: #{tpu_custom_call.1} parent=1 // pred_check
      _
    $region19: #{tpu_custom_call.1} parent=1 // pred_check_branch
      %48 = sbr.rel (0) target = $region21
    $region20: #{tpu_custom_call.1} parent=1 // pred_region
      %50 = dma.done [#allocation7], 32
    $region21: #{tpu_custom_call.1} parent=1 // pred_fallthru
      _
    // Predicated region
    $region22: #{tpu_custom_call.1} parent=1 // pred_check
      _
    $region23: #{tpu_custom_call.1} parent=1 // pred_check_branch
      %52 = sbr.rel (0) target = $region25
    $region24: #{tpu_custom_call.1} parent=1 // pred_region
      %54 = dma.done [#allocation5], 16
    $region25: #{tpu_custom_call.1} parent=1 // pred_fallthru
      _
    %55 = sfence
    %v56 = vld [vmem:[#allocation2] sm:$0x3]
    %v57 = vld [vmem:[#allocation6] sm:$0x3]
    %v58 = vlaneseq
    %v59 = vand.u32 %v58, 127
    %vm60 = vcmp.eq.s32.totalorder %v59, 0
    %s61 = sld [smem:[#allocation8]]
    %s62 = sld [smem:[#allocation8 + $0x1]]
    %v63 = vstv %s61
    %v64 = vstv %s62
    %v65 = vsel %vm60, %v63, %v64
    %vm66 = vcmask 261120
    %v68 = vsel %vm66, %v56, 0
    %v71 = vsel %vm66, %v57, 0
    %73 = vmatpush.xpose.msra.mxu0 0.0
    %74 = vmatpush.xpose.msra.mxu0 0.0
    %75 = vmatpush.xpose.msra.mxu0 0.0
    %76 = vmatpush.xpose.msra.mxu0 0.0
    %77 = vmatpush.xpose.msra.mxu0 0.0
    %78 = vmatpush.xpose.msra.mxu0 0.0
    %79 = vmatpush.xpose.msra.mxu0 0.0
    %80 = vmatpush.xpose.msra.mxu0 0.0
    %81 = vmatpush.xpose.msra.mxu0 0.0
    %82 = vmatpush.xpose.msra.mxu0 0.0
    %83 = vmatpush.xpose.msra.mxu0 0.0
    %84 = vmatpush.xpose.msra.mxu0 0.0
    %85 = vmatpush.xpose.msra.mxu0 0.0
    %86 = vmatpush.xpose.msra.mxu0 0.0
    %87 = vmatpush.xpose.msra.mxu0 0.0
    %88 = vmatpush.xpose.msra.mxu0 %v71
    %89 = vmatmul.f32.gmra.mxu0 %v68
    %v90 = vpop.f32.mrf.mxu0
    %v91 = vadd.f32 %v65, %v90
    %92 = vdwg.mxu0
    %vm93 = vcmask 9216
    %94 = vst.msk [vmem:[#allocation9] sm:$0x3] %vm93, %v91
    // Predicated region
    $region26: #{tpu_custom_call.1} parent=1 // pred_check
      _
    $region27: #{tpu_custom_call.1} parent=1 // pred_check_branch
      %96 = sbr.rel (0) target = $region29
    $region28: #{tpu_custom_call.1} parent=1 // pred_region
      %98 = vsyncadd [#allocation4], 0
      %s100 = sshll.u32 [#allocation9], 4
      %s101 = int_to_ptr.vmem [resolvable:$true] %s100
      %s102 = sshll.u32 %s3, 4
      %s103 = int_to_ptr.hbm [resolvable:$true] %s102
      %105 = dma.vmem_to_hbm [thread:$0]  %s101, 32, %s103, [#allocation4]
    $region29: #{tpu_custom_call.1} parent=1 // pred_fallthru
      _
    // Predicated region
    $region30: #{tpu_custom_call.1} parent=1 // pred_check
      _
    $region31: #{tpu_custom_call.1} parent=1 // pred_check_branch
      %107 = sbr.rel (0) target = $region33
    $region32: #{tpu_custom_call.1} parent=1 // pred_region
      %109 = dma.done [#allocation4], 32
    $region33: #{tpu_custom_call.1} parent=1 // pred_fallthru
      _
    %110 = vsyncpa [#allocation3], 1
    %111 = vsyncpa [#allocation7], 1
    %112 = vsyncpa [#allocation4], 1
    %113 = vsyncpa [#allocation5], 1

</llo_original>
